<compile_context>
chip_gen: v6e
topology: v6e:2x2x1
jax: 0.10.0
libtpu: 0.0.40
codegen_flags: <defaults>
</compile_context>

<pallas_src>
import functools

import jax
import jax.numpy as jnp
from jax import lax
from jax.experimental import pallas as pl
from jax.experimental.pallas import tpu as pltpu


def _pair(v):
    if isinstance(v, (tuple, list)):
        return int(v[0]), int(v[1])
    return int(v), int(v)


def _slice_axis(x, axis, start, count, stride):
    """Static strided slice of `count` elements along `axis`."""
    idx = [slice(None)] * x.ndim
    idx[axis] = slice(start, start + (count - 1) * stride + 1, stride)
    return x[tuple(idx)]


def _edge_broadcast(x, axis, index, count):
    """Replicate row/col `index` along `axis` `count` times (edge padding)."""
    edge = _slice_axis(x, axis, index, 1, 1)
    shape = list(x.shape)
    shape[axis] = count
    return jnp.broadcast_to(edge, tuple(shape))


def _pool_axis(x, *, axis, k, stride, dil, pad_lo, n_out):
    """1-D replicate-padded max pooling along `axis` (static, fully unrolled).

    Never builds a padded plane: each tap is a direct strided slice of `x`;
    clamped boundary positions are filled from a thin broadcast of the edge
    row/col only when that tap actually overruns the array.  The max is
    accumulated in the native dtype, seeded from the first tap.
    """
    size = x.shape[axis]
    acc = None
    for t in range(k):
        off = t * dil - pad_lo
        n_lo = 0 if off >= 0 else min(n_out, (-off + stride - 1) // stride)
        last_valid = (size - 1 - off) // stride
        n_hi = min(max(0, n_out - 1 - last_valid), n_out - n_lo)
        n_valid = n_out - n_lo - n_hi

        pieces = []
        if n_lo:
            pieces.append(_edge_broadcast(x, axis, 0, n_lo))
        if n_valid:
            pieces.append(_slice_axis(x, axis, n_lo * stride + off, n_valid, stride))
        if n_hi:
            pieces.append(_edge_broadcast(x, axis, size - 1, n_hi))
        tap = pieces[0] if len(pieces) == 1 else jnp.concatenate(pieces, axis=axis)
        acc = tap if acc is None else jnp.maximum(acc, tap)
    return acc


def _maxpool_kernel(x_ref, o_ref, *, kh, kw, sh, sw, dh, dw,
                    pad_top, pad_left, Ho, Wo):
    # x_ref block: (1, Ct, H, W)   o_ref block: (1, Ct, Ho, Wo)  -- native NCHW
    x = x_ref[0]                                                # (Ct, H, W)
    # Separable max pooling: lane (W) pass first so the sublane (H) pass runs
    # on the already-narrowed (Ct, H, Wo) intermediate.
    y = _pool_axis(x, axis=2, k=kw, stride=sw, dil=dw, pad_lo=pad_left, n_out=Wo)
    y = _pool_axis(y, axis=1, k=kh, stride=sh, dil=dh, pad_lo=pad_top, n_out=Ho)
    o_ref[0] = y.astype(o_ref.dtype)


def _largest_divisor_tile(C, cap):
    """Largest divisor of C that is <= cap; fall back to cap if the best
    divisor wastes more than half of the budget (ragged last tile is still
    correct, stores are masked)."""
    cap = max(1, min(C, cap))
    best = 1
    for d in range(cap, 0, -1):
        if C % d == 0:
            best = d
            break
    return best if best * 2 > cap else cap


class PaddedMaxPool2d:
    """Maxpool layer with replicating padding (Pallas TPU implementation)."""

    def __init__(self, kernel_size, stride=None, padding=(0, 0, 0, 0), dilation=1):
        self.kernel_size = kernel_size
        self.stride = stride or kernel_size
        self.padding = tuple(int(p) for p in padding)   # (left, right, top, bottom)
        self.dilation = dilation

    def __call__(self, x):
        kh, kw = _pair(self.kernel_size)
        sh, sw = _pair(self.stride)
        dh, dw = _pair(self.dilation)
        left, right, top, bottom = self.padding

        N, C, H, W = x.shape
        Hp, Wp = H + top + bottom, W + left + right
        Ho = (Hp - dh * (kh - 1) - 1) // sh + 1
        Wo = (Wp - dw * (kw - 1) - 1) // sw + 1

        bpe = jnp.dtype(x.dtype).itemsize

        # ---- Chip-aware VMEM limit / block budget ----------------------------
        try:
            vmem_cap = int(getattr(pltpu.get_tpu_info(), "vmem_capacity_bytes", 0)) or (64 << 20)
        except Exception:  # pragma: no cover - interpret mode / older runtimes
            vmem_cap = 64 << 20
        small_vmem = vmem_cap <= (64 << 20)            # v7x: 64 MiB per TensorCore
        vmem_limit = (32 << 20) if small_vmem else (64 << 20)
        block_budget = (3 << 20) if small_vmem else (6 << 20)

        # ---- Channel tiling ---------------------------------------------------
        plane_bytes = max(1, H * W * bpe)
        c_tile = _largest_divisor_tile(C, max(1, block_budget // plane_bytes))
        # Megacore: give a v7x chip (2 TCs) at least 2 parallel grid steps.
        if N * pl.cdiv(C, c_tile) < 2 and C >= 2:
            c_tile = _largest_divisor_tile(C, (C + 1) // 2)
        # TODO(synk): N == 1 and C == 1 with a huge plane would need an H-split
        # grid axis with halo rows; not needed for YOLO-scale feature maps.
        n_ct = pl.cdiv(C, c_tile)

        kernel = functools.partial(
            _maxpool_kernel, kh=kh, kw=kw, sh=sh, sw=sw, dh=dh, dw=dw,
            pad_top=top, pad_left=left, Ho=Ho, Wo=Wo)

        cost = pl.CostEstimate(
            flops=int(max(kh * kw - 1, 1)) * N * C * Ho * Wo,
            transcendentals=0,
            bytes_accessed=int(N * C * H * W * bpe + N * C * Ho * Wo * bpe))

        return pl.pallas_call(
            kernel,
            out_shape=jax.ShapeDtypeStruct((N, C, Ho, Wo), x.dtype),
            grid=(N, n_ct),
            in_specs=[pl.BlockSpec((1, c_tile, H, W), lambda n, c: (n, c, 0, 0))],
            out_specs=pl.BlockSpec((1, c_tile, Ho, Wo), lambda n, c: (n, c, 0, 0)),
            compiler_params=pltpu.CompilerParams(
                dimension_semantics=("parallel", "parallel"),
                vmem_limit_bytes=vmem_limit),
            cost_estimate=cost,
        )(x)


def _reference(x, kernel_size, stride, padding, dilation):
    kh, kw = _pair(kernel_size)
    sh, sw = _pair(stride)
    dh, dw = _pair(dilation)
    left, right, top, bottom = padding
    xp = jnp.pad(x, ((0, 0), (0, 0), (top, bottom), (left, right)), mode="edge")
    if jnp.issubdtype(x.dtype, jnp.floating):
        init = -jnp.inf
    else:
        init = int(jnp.iinfo(x.dtype).min)
    return lax.reduce_window(
        xp, init, lax.max,
        window_dimensions=(1, 1, kh, kw),
        window_strides=(1, 1, sh, sw),
        padding="VALID",
        window_dilation=(1, 1, dh, dw),
    ).astype(x.dtype)


if __name__ == "__main__":
    # YOLOv3-tiny style usage: kernel_size=2, stride=1, padding=(0,1,0,1)
    kernel_size = 2
    stride = 1
    padding = (0, 1, 0, 1)  # (left, right, top, bottom)
    dilation = 1

    key = jax.random.PRNGKey(0)
    x = jax.random.normal(key, (2, 4, 16, 16), dtype=jnp.float32)

    module = PaddedMaxPool2d(kernel_size, stride, padding, dilation)
    out = jax.block_until_ready(module(x))

    ref = _reference(x, kernel_size, stride, padding, dilation)
    assert out.shape == ref.shape, (out.shape, ref.shape)
    assert jnp.allclose(out, ref), "Pallas maxpool mismatch vs reference"

    print("KERNEL_OK")
</pallas_src>

<mosaic_0001>
module attributes {stable_mosaic.version = 11 : i64} {
  func.func @_maxpool_kernel(%arg0: i32, %arg1: i32, %arg2: memref<1x4x16x16xf32, #tpu.memory_space<vmem>>, %arg3: memref<1x4x16x16xf32, #tpu.memory_space<vmem>>) attributes {dimension_semantics = [#tpu.dimension_semantics<parallel>, #tpu.dimension_semantics<parallel>], iteration_bounds = array<i64: 2, 1>, scalar_prefetch = 0 : i64, scratch_operands = 0 : i64, tpu.core_type = #tpu.core_type<tc>, window_params = [{transform_indices = @transform_0, window_bounds = array<i64: 1, 4, 16, 16>}, {transform_indices = @transform_1, window_bounds = array<i64: 1, 4, 16, 16>}]} {
    %c0 = arith.constant 0 : index
    %c0_0 = arith.constant 0 : index
    %c0_1 = arith.constant 0 : index
    %c0_2 = arith.constant 0 : index
    %0 = vector.load %arg2[%c0, %c0_0, %c0_1, %c0_2] : memref<1x4x16x16xf32, #tpu.memory_space<vmem>>, vector<1x4x16x16xf32>
    %1 = vector.shape_cast %0 : vector<1x4x16x16xf32> to vector<4x16x16xf32>
    %2 = vector.extract_strided_slice %1 {offsets = [0, 0, 1], sizes = [4, 16, 15], strides = [1, 1, 1]} : vector<4x16x16xf32> to vector<4x16x15xf32>
    %3 = vector.extract_strided_slice %1 {offsets = [0, 0, 15], sizes = [4, 16, 1], strides = [1, 1, 1]} : vector<4x16x16xf32> to vector<4x16x1xf32>
    %4 = tpu.concatenate %2, %3 in 2 : vector<4x16x15xf32>, vector<4x16x1xf32> -> vector<4x16x16xf32>
    %5 = arith.maximumf %1, %4 : vector<4x16x16xf32>
    %6 = vector.extract_strided_slice %5 {offsets = [0, 1, 0], sizes = [4, 15, 16], strides = [1, 1, 1]} : vector<4x16x16xf32> to vector<4x15x16xf32>
    %7 = vector.extract_strided_slice %5 {offsets = [0, 15, 0], sizes = [4, 1, 16], strides = [1, 1, 1]} : vector<4x16x16xf32> to vector<4x1x16xf32>
    %8 = tpu.concatenate %6, %7 in 1 : vector<4x15x16xf32>, vector<4x1x16xf32> -> vector<4x16x16xf32>
    %9 = arith.maximumf %5, %8 : vector<4x16x16xf32>
    %c0_3 = arith.constant 0 : index
    %c0_4 = arith.constant 0 : index
    %c0_5 = arith.constant 0 : index
    %c0_6 = arith.constant 0 : index
    %10 = vector.load %arg3[%c0_3, %c0_4, %c0_5, %c0_6] : memref<1x4x16x16xf32, #tpu.memory_space<vmem>>, vector<1x4x16x16xf32>
    %11 = vector.shape_cast %10 : vector<1x4x16x16xf32> to vector<4x16x16xf32>
    %12 = vector.shape_cast %9 : vector<4x16x16xf32> to vector<1x4x16x16xf32>
    tpu.vector_store %arg3[%c0_3, %c0_4, %c0_5, %c0_6], %12 {strides = array<i32>} : memref<1x4x16x16xf32, #tpu.memory_space<vmem>>, vector<1x4x16x16xf32>,
    return
  }
  func.func @transform_0(%arg0: i32, %arg1: i32) -> (i32, i32, i32, i32) {
    %c0_i32 = arith.constant 0 : i32
    %c0_i32_0 = arith.constant 0 : i32
    %c0_i32_1 = arith.constant 0 : i32
    return %arg0, %arg1, %c0_i32, %c0_i32_0 : i32, i32, i32, i32
  }
  func.func @transform_1(%arg0: i32, %arg1: i32) -> (i32, i32, i32, i32) {
    %c0_i32 = arith.constant 0 : i32
    %c0_i32_0 = arith.constant 0 : i32
    %c0_i32_1 = arith.constant 0 : i32
    return %arg0, %arg1, %c0_i32, %c0_i32_0 : i32, i32, i32, i32
  }
}

</mosaic_0001>

<llo_original>
// kernel: tpu_custom_call.1
$region0: #{tpu_custom_call.1}
  #allocation0 [shape = 'u32[]', space=smem, size = 0x4, offset = 0x4, fixed_abs, tag = 'smem constant byte address 0x4 - core index']
  #allocation1 [shape = 'u32[144,128]{1,0:T(1,128)}', space=vmem, size = 0x12000, scoped, tag = 'internal scratch']
  %s0 = inlined_call_operand.hbm [shape: f32[2,4,16,16], index: 0, kind: input, shape index: {}]
  %s1 = inlined_call_operand.hbm [shape: f32[2,4,16,16], index: 1, kind: output, shape index: {}]
  %s2 = sld [smem:[#allocation0]]
  $region41: #{tpu_custom_call.1} parent=0
    _
  %s4 = ssub.s32 1, %s2
  %s5 = scalar_select 0, %s4, %s2
  $region1: #{tpu_custom_call.1} parent=0
    #allocation2 [shape = 'u8[65536]{0}', space=vmem, size = 0x10000, scoped, tag = 'input window, operand 0']
    #allocation3 [shape = 's32[2]{0}', space=sflag, size = 0x8, scoped, tag = 'scoped memory for tpu_custom_call.1']
    #allocation4 [shape = 's32[2]{0}', space=sflag, size = 0x8, scoped, tag = 'scoped memory for tpu_custom_call.1']
    #allocation5 [shape = 'u8[65536]{0}', space=vmem, size = 0x10000, scoped, tag = 'output window, operand 0']
    %6 = vsyncpa [#allocation3], 0
    %s7 = scalar_lea.sflag [#allocation3], 1
    %8 = vsyncpa %s7, 0
    %9 = vsyncpa [#allocation4], 0
    %s10 = scalar_lea.sflag [#allocation4], 1
    %11 = vsyncpa %s10, 0
    loop: start=0, step=1, limit=4
    $region2: #{tpu_custom_call.1} parent=1 // loop_pre_header
      _
    $region3: #{tpu_custom_call.1} parent=1 // loop_header
      %s13 = sphi 0, %s17
      %p14 = scmp.ge.s32.totalorder %s13, 4
      %s20 = sphi 0, %s32
      %s21 = sphi 0, %s28
      %s22 = sphi 0, %s20
      %s23 = sphi 0, %s21
      %s24 = sphi 0, %s22
      %s25 = sphi 0, %s23
      %s37 = sphi 0, %s39
      %s40 = sphi 0, %s37
      %s41 = sphi 0, %s40
      %s57 = sphi 0, %s41
      %s65 = sphi 0, %s67
      %s68 = sphi 0, %s65
      %s69 = sphi 0, %s68
      %s85 = sphi 0, %s69
    $region4: #{tpu_custom_call.1} parent=1 // loop_header_branch
      %16 = sbr.rel (%p14) target = $region8
    $region5: #{tpu_custom_call.1} parent=1 // loop_body
      %s18 = ssub.s32 %s13, 1
      %s19 = ssub.s32 %s13, 2
      %s26 = sadd.s32 1, %s21
      %p27 = scmp.ge.s32.totalorder %s26, 1
      %s28 = scalar_select %p27, 0, %s26
      %s29 = sadd.s32 1, %s20
      %s30 = scalar_select %p27, %s29, %s20
      %p31 = scmp.ge.s32.totalorder %s30, 2
      %s32 = scalar_select %p31, 0, %s30
      %s33 = ssub.s32 %s20, %s32
      %s34 = ssub.s32 %s21, %s28
      %s35 = sor.u32 %s33, %s34
      %p36 = scmp.eq.s32.totalorder %s35, 0
      %s38 = sadd.s32 %s37, 1
      %s39 = scalar_select %p36, %s37, %s38
      %p42 = pneg %p36
      %p43 = scmp.eq.s32.totalorder %s13, 1
      %p44 = por %p42, %p43
      %p45 = scmp.ne.s32.totalorder %s37, %s40
      %p46 = scmp.eq.s32.totalorder %s13, 0
      %p47 = por %p45, %p46
      %p48 = scmp.ne.s32.totalorder %s37, %s40
      %p49 = scmp.eq.s32.totalorder %s18, 1
      %p50 = por %p48, %p49
      %p51 = scmp.ne.s32.totalorder %s40, %s41
      %p52 = scmp.eq.s32.totalorder %s18, 0
      %p53 = por %p51, %p52
      %p54 = scmp.ne.s32.totalorder %s40, %s41
      %p55 = scmp.eq.s32.totalorder %s19, 1
      %p56 = por %p54, %p55
      %p58 = scmp.ne.s32.totalorder %s41, %s57
      %p59 = scmp.eq.s32.totalorder %s19, 0
      %p60 = por %p58, %p59
      %s61 = ssub.s32 %s20, %s32
      %s62 = ssub.s32 %s21, %s28
      %s63 = sor.u32 %s61, %s62
      %p64 = scmp.eq.s32.totalorder %s63, 0
      %s66 = sadd.s32 %s65, 1
      %s67 = scalar_select %p64, %s65, %s66
      %p70 = pneg %p64
      %p71 = scmp.eq.s32.totalorder %s13, 1
      %p72 = por %p70, %p71
      %p73 = scmp.ne.s32.totalorder %s65, %s68
      %p74 = scmp.eq.s32.totalorder %s13, 0
      %p75 = por %p73, %p74
      %p76 = scmp.ne.s32.totalorder %s65, %s68
      %p77 = scmp.eq.s32.totalorder %s18, 1
      %p78 = por %p76, %p77
      %p79 = scmp.ne.s32.totalorder %s68, %s69
      %p80 = scmp.eq.s32.totalorder %s18, 0
      %p81 = por %p79, %p80
      %p82 = scmp.ne.s32.totalorder %s68, %s69
      %p83 = scmp.eq.s32.totalorder %s19, 1
      %p84 = por %p82, %p83
      %p86 = scmp.ne.s32.totalorder %s69, %s85
      %p87 = scmp.eq.s32.totalorder %s19, 0
      %p88 = por %p86, %p87
      %p89 = scmp.le.s32.totalorder 1, %s13
      %p90 = scmp.lt.s32.totalorder %s13, 3
      %p91 = pnand %p89, %p90
      %p92 = pneg %p91
      // Predicated region
      $region9: #{tpu_custom_call.1} parent=5 // pred_check
        _
      $region10: #{tpu_custom_call.1} parent=5 // pred_check_branch
        %94 = sbr.rel (%p91) target = $region12
      $region11: #{tpu_custom_call.1} parent=5 // pred_region
        %s95 = ssub.s32 %s13, 1
      $region12: #{tpu_custom_call.1} parent=5 // pred_fallthru
        _
      %p96 = scmp.lt.s32.totalorder %s13, 2
      // Predicated region
      $region13: #{tpu_custom_call.1} parent=5 // pred_check
        %p97 = pneg %p96
      $region14: #{tpu_custom_call.1} parent=5 // pred_check_branch
        %99 = sbr.rel (%p97) target = $region16
      $region15: #{tpu_custom_call.1} parent=5 // pred_region
        // Predicated region
        $region17: #{tpu_custom_call.1} parent=15 // pred_check
          %p100 = pneg %p47
        $region18: #{tpu_custom_call.1} parent=15 // pred_check_branch
          %102 = sbr.rel (%p100) target = $region20
        $region19: #{tpu_custom_call.1} parent=15 // pred_region
          %s103 = sand.u32 %s37, 1
          %s104 = scalar_lea.sflag [#allocation3], %s103
          %s105 = sand.u32 %s37, 1
          %s106 = smul.addr %s105, 64
          %s107 = scalar_lea.vmem [#allocation2], %s106
          %s108 = smul.u32 4, %s21
          %s110 = ssub.s32 1024, 1024
          %111 = vsyncadd %s104, %s110
          %s112 = smul.addr %s108, 2
          %s113 = smul.addr %s20, 8
          %s114 = sadd.s32 %s112, %s113
          %s115 = smul.addr %s114, 128
          %s116 = scalar_lea.hbm %s0, %s115
          %s117 = sshll.u32 %s107, 4
          %s118 = int_to_ptr.vmem [resolvable:$true] %s117
          %123 = dma.hbm_to_vmem [thread:$0]  %s116, 1024, %s118, %s104, 128, 128, 8
        $region20: #{tpu_custom_call.1} parent=15 // pred_fallthru
          _
      $region16: #{tpu_custom_call.1} parent=5 // pred_fallthru
        _
      %p124 = scmp.le.s32.totalorder 1, %s13
      %p125 = scmp.lt.s32.totalorder %s13, 3
      %p126 = pnand %p124, %p125
      %p127 = pneg %p126
      // Predicated region
      $region21: #{tpu_custom_call.1} parent=5 // pred_check
        _
      $region22: #{tpu_custom_call.1} parent=5 // pred_check_branch
        %129 = sbr.rel (%p126) target = $region24
      $region23: #{tpu_custom_call.1} parent=5 // pred_region
        %s130 = ssub.s32 %s13, 1
        %s131 = sand.u32 %s40, 1
        %s132 = scalar_lea.sflag [#allocation3], %s131
        %s133 = sand.u32 %s40, 1
        %s134 = smul.addr %s133, 64
        %s135 = scalar_lea.vmem [#allocation2], %s134
        // Predicated region
        $region25: #{tpu_custom_call.1} parent=23 // pred_check
          %p136 = pneg %p53
        $region26: #{tpu_custom_call.1} parent=23 // pred_check_branch
          %138 = sbr.rel (%p136) target = $region28
        $region27: #{tpu_custom_call.1} parent=23 // pred_region
          %139 = dma.done %s132, 1024
        $region28: #{tpu_custom_call.1} parent=23 // pred_fallthru
          _
        %s140 = sand.u32 %s40, 1
        %s141 = scalar_lea.sflag [#allocation3], %s140
        %s142 = sand.u32 %s40, 1
        %s143 = smul.addr %s142, 64
        %s144 = scalar_lea.vmem [#allocation2], %s143
        %p145 = pneg %p53
        %p146 = pneg %p50
        %p147 = pneg %p81
        %p148 = pneg %p78
        %s149 = sand.u32 %s68, 1
        %s150 = scalar_lea.sflag [#allocation4], %s149
        %s151 = sand.u32 %s68, 1
        %s152 = smul.addr %s151, 64
        %s153 = scalar_lea.vmem [#allocation5], %s152
        %s154 = smul.u32 4, %s23
        %s155 = smul.u32 4, %s23
        %v156 = vld [vmem:[%s135] sm:$0xff]
        %v157 = vld [vmem:[%s135 + $0x8] sm:$0xff]
        %v158 = vld [vmem:[%s135 + $0x10] sm:$0xff]
        %v159 = vld [vmem:[%s135 + $0x18] sm:$0xff]
        %v160 = vld [vmem:[%s135 + $0x20] sm:$0xff]
        %v161 = vld [vmem:[%s135 + $0x28] sm:$0xff]
        %v162 = vld [vmem:[%s135 + $0x30] sm:$0xff]
        %v163 = vld [vmem:[%s135 + $0x38] sm:$0xff]
        %172 = vrot.lane.b32.xlu0 %v156, 127
        %v173 = vpop.permute.xlu0 %172
        %174 = vrot.lane.b32.xlu0 %v157, 127
        %v175 = vpop.permute.xlu0 %174
        %176 = vrot.lane.b32.xlu0 %v158, 127
        %v177 = vpop.permute.xlu0 %176
        %178 = vrot.lane.b32.xlu0 %v159, 127
        %v179 = vpop.permute.xlu0 %178
        %180 = vrot.lane.b32.xlu0 %v160, 127
        %v181 = vpop.permute.xlu0 %180
        %182 = vrot.lane.b32.xlu0 %v161, 127
        %v183 = vpop.permute.xlu0 %182
        %184 = vrot.lane.b32.xlu0 %v162, 127
        %v185 = vpop.permute.xlu0 %184
        %186 = vrot.lane.b32.xlu0 %v163, 127
        %v187 = vpop.permute.xlu0 %186
        %vm196 = vcmask 121856
        %v197 = vsel %vm196, %v173, %v156
        %v198 = vsel %vm196, %v175, %v157
        %v199 = vsel %vm196, %v177, %v158
        %v200 = vsel %vm196, %v179, %v159
        %v201 = vsel %vm196, %v181, %v160
        %v202 = vsel %vm196, %v183, %v161
        %v203 = vsel %vm196, %v185, %v162
        %v204 = vsel %vm196, %v187, %v163
        %v205 = vmax.f32 %v156, %v197
        %v206 = vmax.f32 %v157, %v198
        %v207 = vmax.f32 %v158, %v199
        %v208 = vmax.f32 %v159, %v200
        %v209 = vmax.f32 %v160, %v201
        %v210 = vmax.f32 %v161, %v202
        %v211 = vmax.f32 %v162, %v203
        %v212 = vmax.f32 %v163, %v204
        %vm221 = vcmask 1046528
        %v222 = vrot.slane %v205, 1
        %v223 = vrot.slane %v206, 1
        %v224 = vsel %vm221, %v222, %v223
        %v225 = vrot.slane %v207, 1
        %v226 = vrot.slane %v208, 1
        %v227 = vsel %vm221, %v225, %v226
        %v228 = vrot.slane %v209, 1
        %v229 = vrot.slane %v210, 1
        %v230 = vsel %vm221, %v228, %v229
        %v231 = vrot.slane %v211, 1
        %v232 = vrot.slane %v212, 1
        %v233 = vsel %vm221, %v231, %v232
        %v242 = vsel %vm221, %v223, %v206
        %v243 = vsel %vm221, %v226, %v208
        %v244 = vsel %vm221, %v229, %v210
        %v245 = vsel %vm221, %v232, %v212
        %v246 = vmax.f32 %v205, %v224
        %v247 = vmax.f32 %v206, %v242
        %v248 = vmax.f32 %v207, %v227
        %v249 = vmax.f32 %v208, %v243
        %v250 = vmax.f32 %v209, %v230
        %v251 = vmax.f32 %v210, %v244
        %v252 = vmax.f32 %v211, %v233
        %v253 = vmax.f32 %v212, %v245
        %vm254 = vcmask 130048
        %255 = vst.msk [vmem:[%s153] sm:$0xff] %vm254, %v246
        %256 = vst.msk [vmem:[%s153 + $0x8] sm:$0xff] %vm254, %v247
        %257 = vst.msk [vmem:[%s153 + $0x10] sm:$0xff] %vm254, %v248
        %258 = vst.msk [vmem:[%s153 + $0x18] sm:$0xff] %vm254, %v249
        %259 = vst.msk [vmem:[%s153 + $0x20] sm:$0xff] %vm254, %v250
        %260 = vst.msk [vmem:[%s153 + $0x28] sm:$0xff] %vm254, %v251
        %261 = vst.msk [vmem:[%s153 + $0x30] sm:$0xff] %vm254, %v252
        %262 = vst.msk [vmem:[%s153 + $0x38] sm:$0xff] %vm254, %v253
        %s263 = sand.u32 %s68, 1
        %s264 = scalar_lea.sflag [#allocation4], %s263
        %s265 = sand.u32 %s68, 1
        %s266 = smul.addr %s265, 64
        %s267 = scalar_lea.vmem [#allocation5], %s266
        // Predicated region
        $region29: #{tpu_custom_call.1} parent=23 // pred_check
          %p268 = pneg %p78
        $region30: #{tpu_custom_call.1} parent=23 // pred_check_branch
          %270 = sbr.rel (%p268) target = $region32
        $region31: #{tpu_custom_call.1} parent=23 // pred_region
          %s271 = smul.u32 4, %s23
          %s273 = ssub.s32 1024, 1024
          %274 = vsyncadd %s264, %s273
          %s275 = smul.addr %s271, 2
          %s276 = smul.addr %s22, 8
          %s277 = sadd.s32 %s275, %s276
          %s278 = smul.addr %s277, 128
          %s279 = scalar_lea.hbm %s1, %s278
          %s280 = sshll.u32 %s267, 4
          %s281 = int_to_ptr.vmem [resolvable:$true] %s280
          %286 = dma.vmem_to_hbm [thread:$0]  %s281, 1024, %s279, %s264, 128, 128, 8
        $region32: #{tpu_custom_call.1} parent=23 // pred_fallthru
          _
      $region24: #{tpu_custom_call.1} parent=5 // pred_fallthru
        _
      %p287 = scmp.le.s32.totalorder 2, %s13
      // Predicated region
      $region33: #{tpu_custom_call.1} parent=5 // pred_check
        %p288 = pneg %p287
      $region34: #{tpu_custom_call.1} parent=5 // pred_check_branch
        %290 = sbr.rel (%p288) target = $region36
      $region35: #{tpu_custom_call.1} parent=5 // pred_region
        %s291 = ssub.s32 %s13, 2
        // Predicated region
        $region37: #{tpu_custom_call.1} parent=35 // pred_check
          %p292 = pneg %p84
        $region38: #{tpu_custom_call.1} parent=35 // pred_check_branch
          %294 = sbr.rel (%p292) target = $region40
        $region39: #{tpu_custom_call.1} parent=35 // pred_region
          %s295 = sand.u32 %s69, 1
          %s296 = scalar_lea.sflag [#allocation4], %s295
          %s297 = sand.u32 %s69, 1
          %s298 = smul.addr %s297, 64
          %s299 = scalar_lea.vmem [#allocation5], %s298
          %300 = dma.done %s296, 1024
        $region40: #{tpu_custom_call.1} parent=35 // pred_fallthru
          _
      $region36: #{tpu_custom_call.1} parent=5 // pred_fallthru
        _
    $region6: #{tpu_custom_call.1} parent=1 // loop_footer
      %s17 = sadd.s32 1, %s13
    $region7: #{tpu_custom_call.1} parent=1 // loop_footer_branch
      %12 = sbr.rel target = $region3
    $region8: #{tpu_custom_call.1} parent=1 // loop_exit
      _
    %301 = vsyncpa [#allocation3], 1
    %s302 = scalar_lea.sflag [#allocation3], 1
    %303 = vsyncpa %s302, 1
    %304 = vsyncpa [#allocation4], 1
    %s305 = scalar_lea.sflag [#allocation4], 1
    %306 = vsyncpa %s305, 1

</llo_original>
